<compile_context>
chip_gen: v5e
topology: v5e:2x2
jax: 0.10.0
libtpu: 0.0.40
codegen_flags: <defaults>
</compile_context>

<pallas_src>
import jax
import jax.numpy as jnp
from jax.experimental import pallas as pl
from jax.experimental.pallas import tpu as pltpu

# Small synthetic shapes consistent with the module (inplanes == planes,
# stride=1, downsample=None).
N, H, W = 2, 16, 16
CIN = COUT = 4
CP = 8                      # channels zero-padded to a sublane multiple
HW = H * W                  # 256 lanes = 2 * 128 -> unmasked stores
K = 9 * CP                  # im2col contraction depth
EPS = 1e-5

_TAP_OFFSETS = [(t // 3 - 1, t % 3 - 1) for t in range(9)]   # (dy, dx) per tap


def basic_block_kernel(masks_ref, x_ref, w1_ref, b1_ref, w2_ref, b2_ref,
                       out_ref):
    """Fused conv3x3 -> BN1 -> ReLU -> conv3x3 -> BN2 -> +identity -> ReLU.

    masks_ref: (9, HW)     f32 halo masks (1 = in-bounds tap), constant
    x_ref    : (1, CP, HW) f32, one batch element, NCHW flattened
    w*_ref   : (CP, 9*CP)  bf16, BN scale folded, tap-major K layout
    b*_ref   : (CP, 1)     f32 folded BN bias
    out_ref  : (1, CP, HW) f32
    """
    x = x_ref[0]                                   # (CP, HW) f32

    def im2col_bf16(v):
        # One rolled + halo-masked copy of v per tap, stacked along the
        # contraction (sublane) axis -> (9*CP, HW), cast once to bf16 for
        # the MXU.  Masking is channel-count agnostic ((1, HW) broadcast).
        taps = []
        for t, (dy, dx) in enumerate(_TAP_OFFSETS):
            d = dy * W + dx
            r = pltpu.roll(v, shift=(-d) % HW, axis=1) if d else v
            taps.append(r * masks_ref[t][None, :])         # f32 halo zeroing
        return jnp.concatenate(taps, axis=0).astype(jnp.bfloat16)

    # conv1 + bn1 + relu : single MXU dot, f32 accumulation, f32 epilogue.
    h1 = jnp.dot(w1_ref[...], im2col_bf16(x),
                 preferred_element_type=jnp.float32) + b1_ref[...]
    h1 = jnp.maximum(h1, 0.0)

    # conv2 + bn2 : single MXU dot.
    h2 = jnp.dot(w2_ref[...], im2col_bf16(h1),
                 preferred_element_type=jnp.float32) + b2_ref[...]

    # residual add + final relu (f32), lane-dense unmasked store.
    out_ref[0] = jnp.maximum(h2 + x, 0.0)


def fold_bn(gamma, beta, mean, var):
    scale = gamma / jnp.sqrt(var + EPS)
    bias = beta - mean * scale
    return scale.astype(jnp.float32), bias.astype(jnp.float32)


def _prep_weight(w_oihw, scale):
    """OIHW conv weight -> (CP, 9*CP) bf16; BN scale folded, zero-padded.

    K layout is tap-major (t*CP + cin) to match the kernel's im2col concat.
    """
    o, i = w_oihw.shape[0], w_oihw.shape[1]
    wf = w_oihw * scale[:, None, None, None]
    wf = jnp.pad(wf, ((0, CP - o), (0, CP - i), (0, 0), (0, 0)))
    wf = jnp.transpose(wf, (0, 2, 3, 1)).reshape(CP, 9 * CP)   # (o, t*CP + c)
    return wf.astype(jnp.bfloat16)


def _prep_bias(bias):
    return jnp.pad(bias, (0, CP - bias.shape[0])).reshape(CP, 1).astype(
        jnp.float32)


def _make_masks():
    # Hoisted out of the kernel: identical across grid steps and both convs.
    pos = jnp.arange(HW, dtype=jnp.int32)
    yy, xx = pos // W, pos % W
    rows = []
    for dy, dx in _TAP_OFFSETS:
        ok = (yy + dy >= 0) & (yy + dy < H) & (xx + dx >= 0) & (xx + dx < W)
        rows.append(ok.astype(jnp.float32))
    return jnp.stack(rows, axis=0)                  # (9, HW)


def basic_block_forward(x_nchw, params):
    """x_nchw: (N, CIN, H, W) float32, like the PyTorch module input."""
    x_flat = x_nchw.reshape(N, CIN, HW).astype(jnp.float32)
    x_flat = jnp.pad(x_flat, ((0, 0), (0, CP - CIN), (0, 0)))   # (N, CP, HW)

    s1, b1 = fold_bn(params["g1"], params["be1"], params["m1"], params["v1"])
    s2, b2 = fold_bn(params["g2"], params["be2"], params["m2"], params["v2"])

    w1k = _prep_weight(params["w1"], s1)            # (CP, 9*CP) bf16
    w2k = _prep_weight(params["w2"], s2)            # (CP, 9*CP) bf16
    b1c, b2c = _prep_bias(b1), _prep_bias(b2)       # (CP, 1) f32
    masks = _make_masks()                           # (9, HW) f32

    out_flat = pl.pallas_call(
        basic_block_kernel,
        out_shape=jax.ShapeDtypeStruct((N, CP, HW), jnp.float32),
        grid=(N,),
        in_specs=[
            pl.BlockSpec((9, HW), lambda n: (0, 0)),          # halo masks
            pl.BlockSpec((1, CP, HW), lambda n: (n, 0, 0)),   # x (per batch)
            pl.BlockSpec((CP, K), lambda n: (0, 0)),          # w1 (stationary)
            pl.BlockSpec((CP, 1), lambda n: (0, 0)),          # b1
            pl.BlockSpec((CP, K), lambda n: (0, 0)),          # w2
            pl.BlockSpec((CP, 1), lambda n: (0, 0)),          # b2
        ],
        out_specs=pl.BlockSpec((1, CP, HW), lambda n: (n, 0, 0)),
        compiler_params=pltpu.CompilerParams(
            dimension_semantics=("parallel",)),
    )(masks, x_flat, w1k, b1c, w2k, b2c)

    return out_flat[:, :COUT, :].reshape(N, COUT, H, W)


def reference_forward(x_nchw, params):
    """Pure-f32 eval-mode BasicBlock (exact module semantics)."""
    def bn(y, g, be, m, v):
        inv = g / jnp.sqrt(v + EPS)
        return y * inv[None, :, None, None] + (be - m * inv)[None, :, None,
                                                             None]

    dn = ("NCHW", "OIHW", "NCHW")
    out = jax.lax.conv_general_dilated(x_nchw, params["w1"], (1, 1), "SAME",
                                       dimension_numbers=dn)
    out = jnp.maximum(
        bn(out, params["g1"], params["be1"], params["m1"], params["v1"]), 0.0)
    out = jax.lax.conv_general_dilated(out, params["w2"], (1, 1), "SAME",
                                       dimension_numbers=dn)
    out = bn(out, params["g2"], params["be2"], params["m2"],
             params["v2"]) + x_nchw
    return jnp.maximum(out, 0.0)


def reference_forward_bf16(x_nchw, params):
    """Same numerics as the kernel: BN folded into weights, bf16 conv
    operands, f32 accumulation.  Used for a tight correctness check."""
    dn = ("NCHW", "OIHW", "NCHW")

    def conv_bn(v, w, gamma, beta, mean, var):
        scale, bias = fold_bn(gamma, beta, mean, var)
        wf = (w * scale[:, None, None, None]).astype(jnp.bfloat16)
        y = jax.lax.conv_general_dilated(
            v.astype(jnp.bfloat16), wf, (1, 1), "SAME",
            dimension_numbers=dn, preferred_element_type=jnp.float32)
        return y + bias[None, :, None, None]

    h1 = jnp.maximum(conv_bn(x_nchw, params["w1"], params["g1"],
                             params["be1"], params["m1"], params["v1"]), 0.0)
    h2 = conv_bn(h1, params["w2"], params["g2"], params["be2"],
                 params["m2"], params["v2"])
    return jnp.maximum(h2 + x_nchw, 0.0)


def make_params(key):
    ks = jax.random.split(key, 12)
    return {
        "w1": 0.1 * jax.random.normal(ks[0], (COUT, CIN, 3, 3), jnp.float32),
        "w2": 0.1 * jax.random.normal(ks[1], (COUT, COUT, 3, 3), jnp.float32),
        "g1": 1.0 + 0.1 * jax.random.normal(ks[2], (COUT,), jnp.float32),
        "be1": 0.1 * jax.random.normal(ks[3], (COUT,), jnp.float32),
        "m1": 0.05 * jax.random.normal(ks[4], (COUT,), jnp.float32),
        "v1": jax.random.uniform(ks[5], (COUT,), jnp.float32, 0.5, 1.5),
        "g2": 1.0 + 0.1 * jax.random.normal(ks[6], (COUT,), jnp.float32),
        "be2": 0.1 * jax.random.normal(ks[7], (COUT,), jnp.float32),
        "m2": 0.05 * jax.random.normal(ks[8], (COUT,), jnp.float32),
        "v2": jax.random.uniform(ks[9], (COUT,), jnp.float32, 0.5, 1.5),
    }


if __name__ == "__main__":
    key = jax.random.PRNGKey(0)
    k_x, k_p = jax.random.split(key)
    x = jax.random.normal(k_x, (N, CIN, H, W), jnp.float32)   # NCHW like torch
    params = make_params(k_p)

    out = jax.block_until_ready(basic_block_forward(x, params))
    ref_bf16 = jax.block_until_ready(reference_forward_bf16(x, params))
    ref_f32 = jax.block_until_ready(reference_forward(x, params))

    assert out.shape == (N, COUT, H, W)

    # Tight check against a reference with matching (bf16-operand) numerics.
    err_m = float(jnp.max(jnp.abs(out - ref_bf16)))
    assert err_m < 2e-3, f"max diff vs bf16-matched reference = {err_m}"

    # Loose check against exact f32 module semantics (bf16 MXU rounding only).
    err_f = float(jnp.max(jnp.abs(out - ref_f32)))
    assert err_f < 6e-2, f"max diff vs f32 reference = {err_f}"

    print("KERNEL_OK")
</pallas_src>

<mosaic_0001>
module attributes {stable_mosaic.version = 11 : i64} {
  func.func @basic_block_kernel(%arg0: i32, %arg1: memref<9x256xf32, #tpu.memory_space<vmem>>, %arg2: memref<1x8x256xf32, #tpu.memory_space<vmem>>, %arg3: memref<8x72xbf16, #tpu.memory_space<vmem>>, %arg4: memref<8x1xf32, #tpu.memory_space<vmem>>, %arg5: memref<8x72xbf16, #tpu.memory_space<vmem>>, %arg6: memref<8x1xf32, #tpu.memory_space<vmem>>, %arg7: memref<1x8x256xf32, #tpu.memory_space<vmem>>) attributes {dimension_semantics = [#tpu.dimension_semantics<parallel>], iteration_bounds = array<i64: 2>, scalar_prefetch = 0 : i64, scratch_operands = 0 : i64, tpu.core_type = #tpu.core_type<tc>, window_params = [{pipeline_mode = #tpu.pipeline_mode<synchronous>, transform_indices = @transform_0, window_bounds = array<i64: 9, 256>}, {transform_indices = @transform_1, window_bounds = array<i64: 1, 8, 256>}, {pipeline_mode = #tpu.pipeline_mode<synchronous>, transform_indices = @transform_2, window_bounds = array<i64: 8, 72>}, {pipeline_mode = #tpu.pipeline_mode<synchronous>, transform_indices = @transform_3, window_bounds = array<i64: 8, 1>}, {pipeline_mode = #tpu.pipeline_mode<synchronous>, transform_indices = @transform_4, window_bounds = array<i64: 8, 72>}, {pipeline_mode = #tpu.pipeline_mode<synchronous>, transform_indices = @transform_5, window_bounds = array<i64: 8, 1>}, {transform_indices = @transform_6, window_bounds = array<i64: 1, 8, 256>}]} {
    %c0 = arith.constant 0 : index
    %c0_0 = arith.constant 0 : index
    %c0_1 = arith.constant 0 : index
    %0 = vector.load %arg2[%c0, %c0_0, %c0_1] : memref<1x8x256xf32, #tpu.memory_space<vmem>>, vector<1x8x256xf32>
    %1 = vector.shape_cast %0 : vector<1x8x256xf32> to vector<8x256xf32>
    %c0_2 = arith.constant 0 : index
    %c0_3 = arith.constant 0 : index
    %2 = vector.load %arg3[%c0_2, %c0_3] : memref<8x72xbf16, #tpu.memory_space<vmem>>, vector<8x72xbf16>
    %c17_i32 = arith.constant 17 : i32
    %3 = tpu.dynamic_rotate %1 by %c17_i32 dim 1 : vector<8x256xf32>, i32 -> vector<8x256xf32>
    %c0_4 = arith.constant 0 : index
    %c0_5 = arith.constant 0 : index
    %4 = vector.load %arg1[%c0_4, %c0_5] : memref<9x256xf32, #tpu.memory_space<vmem>>, vector<1x256xf32>
    %5 = vector.shape_cast %4 : vector<1x256xf32> to vector<256xf32>
    %6 = vector.shape_cast %5 : vector<256xf32> to vector<1x256xf32>
    %7 = vector.broadcast %6 : vector<1x256xf32> to vector<8x256xf32>
    %8 = arith.mulf %3, %7 : vector<8x256xf32>
    %c16_i32 = arith.constant 16 : i32
    %9 = tpu.dynamic_rotate %1 by %c16_i32 dim 1 : vector<8x256xf32>, i32 -> vector<8x256xf32>
    %c1 = arith.constant 1 : index
    %c0_6 = arith.constant 0 : index
    %10 = vector.load %arg1[%c1, %c0_6] : memref<9x256xf32, #tpu.memory_space<vmem>>, vector<1x256xf32>
    %11 = vector.shape_cast %10 : vector<1x256xf32> to vector<256xf32>
    %12 = vector.shape_cast %11 : vector<256xf32> to vector<1x256xf32>
    %13 = vector.broadcast %12 : vector<1x256xf32> to vector<8x256xf32>
    %14 = arith.mulf %9, %13 : vector<8x256xf32>
    %c15_i32 = arith.constant 15 : i32
    %15 = tpu.dynamic_rotate %1 by %c15_i32 dim 1 : vector<8x256xf32>, i32 -> vector<8x256xf32>
    %c2 = arith.constant 2 : index
    %c0_7 = arith.constant 0 : index
    %16 = vector.load %arg1[%c2, %c0_7] : memref<9x256xf32, #tpu.memory_space<vmem>>, vector<1x256xf32>
    %17 = vector.shape_cast %16 : vector<1x256xf32> to vector<256xf32>
    %18 = vector.shape_cast %17 : vector<256xf32> to vector<1x256xf32>
    %19 = vector.broadcast %18 : vector<1x256xf32> to vector<8x256xf32>
    %20 = arith.mulf %15, %19 : vector<8x256xf32>
    %c1_i32 = arith.constant 1 : i32
    %21 = tpu.dynamic_rotate %1 by %c1_i32 dim 1 : vector<8x256xf32>, i32 -> vector<8x256xf32>
    %c3 = arith.constant 3 : index
    %c0_8 = arith.constant 0 : index
    %22 = vector.load %arg1[%c3, %c0_8] : memref<9x256xf32, #tpu.memory_space<vmem>>, vector<1x256xf32>
    %23 = vector.shape_cast %22 : vector<1x256xf32> to vector<256xf32>
    %24 = vector.shape_cast %23 : vector<256xf32> to vector<1x256xf32>
    %25 = vector.broadcast %24 : vector<1x256xf32> to vector<8x256xf32>
    %26 = arith.mulf %21, %25 : vector<8x256xf32>
    %c4 = arith.constant 4 : index
    %c0_9 = arith.constant 0 : index
    %27 = vector.load %arg1[%c4, %c0_9] : memref<9x256xf32, #tpu.memory_space<vmem>>, vector<1x256xf32>
    %28 = vector.shape_cast %27 : vector<1x256xf32> to vector<256xf32>
    %29 = vector.shape_cast %28 : vector<256xf32> to vector<1x256xf32>
    %30 = vector.broadcast %29 : vector<1x256xf32> to vector<8x256xf32>
    %31 = arith.mulf %1, %30 : vector<8x256xf32>
    %c255_i32 = arith.constant 255 : i32
    %32 = tpu.dynamic_rotate %1 by %c255_i32 dim 1 : vector<8x256xf32>, i32 -> vector<8x256xf32>
    %c5 = arith.constant 5 : index
    %c0_10 = arith.constant 0 : index
    %33 = vector.load %arg1[%c5, %c0_10] : memref<9x256xf32, #tpu.memory_space<vmem>>, vector<1x256xf32>
    %34 = vector.shape_cast %33 : vector<1x256xf32> to vector<256xf32>
    %35 = vector.shape_cast %34 : vector<256xf32> to vector<1x256xf32>
    %36 = vector.broadcast %35 : vector<1x256xf32> to vector<8x256xf32>
    %37 = arith.mulf %32, %36 : vector<8x256xf32>
    %c241_i32 = arith.constant 241 : i32
    %38 = tpu.dynamic_rotate %1 by %c241_i32 dim 1 : vector<8x256xf32>, i32 -> vector<8x256xf32>
    %c6 = arith.constant 6 : index
    %c0_11 = arith.constant 0 : index
    %39 = vector.load %arg1[%c6, %c0_11] : memref<9x256xf32, #tpu.memory_space<vmem>>, vector<1x256xf32>
    %40 = vector.shape_cast %39 : vector<1x256xf32> to vector<256xf32>
    %41 = vector.shape_cast %40 : vector<256xf32> to vector<1x256xf32>
    %42 = vector.broadcast %41 : vector<1x256xf32> to vector<8x256xf32>
    %43 = arith.mulf %38, %42 : vector<8x256xf32>
    %c240_i32 = arith.constant 240 : i32
    %44 = tpu.dynamic_rotate %1 by %c240_i32 dim 1 : vector<8x256xf32>, i32 -> vector<8x256xf32>
    %c7 = arith.constant 7 : index
    %c0_12 = arith.constant 0 : index
    %45 = vector.load %arg1[%c7, %c0_12] : memref<9x256xf32, #tpu.memory_space<vmem>>, vector<1x256xf32>
    %46 = vector.shape_cast %45 : vector<1x256xf32> to vector<256xf32>
    %47 = vector.shape_cast %46 : vector<256xf32> to vector<1x256xf32>
    %48 = vector.broadcast %47 : vector<1x256xf32> to vector<8x256xf32>
    %49 = arith.mulf %44, %48 : vector<8x256xf32>
    %c239_i32 = arith.constant 239 : i32
    %50 = tpu.dynamic_rotate %1 by %c239_i32 dim 1 : vector<8x256xf32>, i32 -> vector<8x256xf32>
    %c8 = arith.constant 8 : index
    %c0_13 = arith.constant 0 : index
    %51 = vector.load %arg1[%c8, %c0_13] : memref<9x256xf32, #tpu.memory_space<vmem>>, vector<1x256xf32>
    %52 = vector.shape_cast %51 : vector<1x256xf32> to vector<256xf32>
    %53 = vector.shape_cast %52 : vector<256xf32> to vector<1x256xf32>
    %54 = vector.broadcast %53 : vector<1x256xf32> to vector<8x256xf32>
    %55 = arith.mulf %50, %54 : vector<8x256xf32>
    %56 = tpu.concatenate %8, %14, %20, %26, %31, %37, %43, %49, %55 in 0 : vector<8x256xf32>, vector<8x256xf32>, vector<8x256xf32>, vector<8x256xf32>, vector<8x256xf32>, vector<8x256xf32>, vector<8x256xf32>, vector<8x256xf32>, vector<8x256xf32> -> vector<72x256xf32>
    %57 = arith.truncf %56 : vector<72x256xf32> to vector<72x256xbf16>
    %cst = arith.constant dense<0.000000e+00> : vector<8x256xf32>
    %58 = tpu.matmul %2, %57, %cst {dimension_numbers = #tpu.dot_dimension_numbers<[1], [0], [0], [1], [0, 0, 1, 1], [], []>} : vector<8x72xbf16>, vector<72x256xbf16>, vector<8x256xf32> -> vector<8x256xf32>
    %c0_14 = arith.constant 0 : index
    %c0_15 = arith.constant 0 : index
    %59 = vector.load %arg4[%c0_14, %c0_15] : memref<8x1xf32, #tpu.memory_space<vmem>>, vector<8x1xf32>
    %60 = vector.broadcast %59 : vector<8x1xf32> to vector<8x256xf32>
    %61 = arith.addf %58, %60 : vector<8x256xf32>
    %cst_16 = arith.constant 0.000000e+00 : f32
    %62 = vector.broadcast %cst_16 : f32 to vector<8x256xf32>
    %63 = arith.maximumf %61, %62 : vector<8x256xf32>
    %c0_17 = arith.constant 0 : index
    %c0_18 = arith.constant 0 : index
    %64 = vector.load %arg5[%c0_17, %c0_18] : memref<8x72xbf16, #tpu.memory_space<vmem>>, vector<8x72xbf16>
    %c17_i32_19 = arith.constant 17 : i32
    %65 = tpu.dynamic_rotate %63 by %c17_i32_19 dim 1 : vector<8x256xf32>, i32 -> vector<8x256xf32>
    %c0_20 = arith.constant 0 : index
    %c0_21 = arith.constant 0 : index
    %66 = vector.load %arg1[%c0_20, %c0_21] : memref<9x256xf32, #tpu.memory_space<vmem>>, vector<1x256xf32>
    %67 = vector.shape_cast %66 : vector<1x256xf32> to vector<256xf32>
    %68 = vector.shape_cast %67 : vector<256xf32> to vector<1x256xf32>
    %69 = vector.broadcast %68 : vector<1x256xf32> to vector<8x256xf32>
    %70 = arith.mulf %65, %69 : vector<8x256xf32>
    %c16_i32_22 = arith.constant 16 : i32
    %71 = tpu.dynamic_rotate %63 by %c16_i32_22 dim 1 : vector<8x256xf32>, i32 -> vector<8x256xf32>
    %c1_23 = arith.constant 1 : index
    %c0_24 = arith.constant 0 : index
    %72 = vector.load %arg1[%c1_23, %c0_24] : memref<9x256xf32, #tpu.memory_space<vmem>>, vector<1x256xf32>
    %73 = vector.shape_cast %72 : vector<1x256xf32> to vector<256xf32>
    %74 = vector.shape_cast %73 : vector<256xf32> to vector<1x256xf32>
    %75 = vector.broadcast %74 : vector<1x256xf32> to vector<8x256xf32>
    %76 = arith.mulf %71, %75 : vector<8x256xf32>
    %c15_i32_25 = arith.constant 15 : i32
    %77 = tpu.dynamic_rotate %63 by %c15_i32_25 dim 1 : vector<8x256xf32>, i32 -> vector<8x256xf32>
    %c2_26 = arith.constant 2 : index
    %c0_27 = arith.constant 0 : index
    %78 = vector.load %arg1[%c2_26, %c0_27] : memref<9x256xf32, #tpu.memory_space<vmem>>, vector<1x256xf32>
    %79 = vector.shape_cast %78 : vector<1x256xf32> to vector<256xf32>
    %80 = vector.shape_cast %79 : vector<256xf32> to vector<1x256xf32>
    %81 = vector.broadcast %80 : vector<1x256xf32> to vector<8x256xf32>
    %82 = arith.mulf %77, %81 : vector<8x256xf32>
    %c1_i32_28 = arith.constant 1 : i32
    %83 = tpu.dynamic_rotate %63 by %c1_i32_28 dim 1 : vector<8x256xf32>, i32 -> vector<8x256xf32>
    %c3_29 = arith.constant 3 : index
    %c0_30 = arith.constant 0 : index
    %84 = vector.load %arg1[%c3_29, %c0_30] : memref<9x256xf32, #tpu.memory_space<vmem>>, vector<1x256xf32>
    %85 = vector.shape_cast %84 : vector<1x256xf32> to vector<256xf32>
    %86 = vector.shape_cast %85 : vector<256xf32> to vector<1x256xf32>
    %87 = vector.broadcast %86 : vector<1x256xf32> to vector<8x256xf32>
    %88 = arith.mulf %83, %87 : vector<8x256xf32>
    %c4_31 = arith.constant 4 : index
    %c0_32 = arith.constant 0 : index
    %89 = vector.load %arg1[%c4_31, %c0_32] : memref<9x256xf32, #tpu.memory_space<vmem>>, vector<1x256xf32>
    %90 = vector.shape_cast %89 : vector<1x256xf32> to vector<256xf32>
    %91 = vector.shape_cast %90 : vector<256xf32> to vector<1x256xf32>
    %92 = vector.broadcast %91 : vector<1x256xf32> to vector<8x256xf32>
    %93 = arith.mulf %63, %92 : vector<8x256xf32>
    %c255_i32_33 = arith.constant 255 : i32
    %94 = tpu.dynamic_rotate %63 by %c255_i32_33 dim 1 : vector<8x256xf32>, i32 -> vector<8x256xf32>
    %c5_34 = arith.constant 5 : index
    %c0_35 = arith.constant 0 : index
    %95 = vector.load %arg1[%c5_34, %c0_35] : memref<9x256xf32, #tpu.memory_space<vmem>>, vector<1x256xf32>
    %96 = vector.shape_cast %95 : vector<1x256xf32> to vector<256xf32>
    %97 = vector.shape_cast %96 : vector<256xf32> to vector<1x256xf32>
    %98 = vector.broadcast %97 : vector<1x256xf32> to vector<8x256xf32>
    %99 = arith.mulf %94, %98 : vector<8x256xf32>
    %c241_i32_36 = arith.constant 241 : i32
    %100 = tpu.dynamic_rotate %63 by %c241_i32_36 dim 1 : vector<8x256xf32>, i32 -> vector<8x256xf32>
    %c6_37 = arith.constant 6 : index
    %c0_38 = arith.constant 0 : index
    %101 = vector.load %arg1[%c6_37, %c0_38] : memref<9x256xf32, #tpu.memory_space<vmem>>, vector<1x256xf32>
    %102 = vector.shape_cast %101 : vector<1x256xf32> to vector<256xf32>
    %103 = vector.shape_cast %102 : vector<256xf32> to vector<1x256xf32>
    %104 = vector.broadcast %103 : vector<1x256xf32> to vector<8x256xf32>
    %105 = arith.mulf %100, %104 : vector<8x256xf32>
    %c240_i32_39 = arith.constant 240 : i32
    %106 = tpu.dynamic_rotate %63 by %c240_i32_39 dim 1 : vector<8x256xf32>, i32 -> vector<8x256xf32>
    %c7_40 = arith.constant 7 : index
    %c0_41 = arith.constant 0 : index
    %107 = vector.load %arg1[%c7_40, %c0_41] : memref<9x256xf32, #tpu.memory_space<vmem>>, vector<1x256xf32>
    %108 = vector.shape_cast %107 : vector<1x256xf32> to vector<256xf32>
    %109 = vector.shape_cast %108 : vector<256xf32> to vector<1x256xf32>
    %110 = vector.broadcast %109 : vector<1x256xf32> to vector<8x256xf32>
    %111 = arith.mulf %106, %110 : vector<8x256xf32>
    %c239_i32_42 = arith.constant 239 : i32
    %112 = tpu.dynamic_rotate %63 by %c239_i32_42 dim 1 : vector<8x256xf32>, i32 -> vector<8x256xf32>
    %c8_43 = arith.constant 8 : index
    %c0_44 = arith.constant 0 : index
    %113 = vector.load %arg1[%c8_43, %c0_44] : memref<9x256xf32, #tpu.memory_space<vmem>>, vector<1x256xf32>
    %114 = vector.shape_cast %113 : vector<1x256xf32> to vector<256xf32>
    %115 = vector.shape_cast %114 : vector<256xf32> to vector<1x256xf32>
    %116 = vector.broadcast %115 : vector<1x256xf32> to vector<8x256xf32>
    %117 = arith.mulf %112, %116 : vector<8x256xf32>
    %118 = tpu.concatenate %70, %76, %82, %88, %93, %99, %105, %111, %117 in 0 : vector<8x256xf32>, vector<8x256xf32>, vector<8x256xf32>, vector<8x256xf32>, vector<8x256xf32>, vector<8x256xf32>, vector<8x256xf32>, vector<8x256xf32>, vector<8x256xf32> -> vector<72x256xf32>
    %119 = arith.truncf %118 : vector<72x256xf32> to vector<72x256xbf16>
    %cst_45 = arith.constant dense<0.000000e+00> : vector<8x256xf32>
    %120 = tpu.matmul %64, %119, %cst_45 {dimension_numbers = #tpu.dot_dimension_numbers<[1], [0], [0], [1], [0, 0, 1, 1], [], []>} : vector<8x72xbf16>, vector<72x256xbf16>, vector<8x256xf32> -> vector<8x256xf32>
    %c0_46 = arith.constant 0 : index
    %c0_47 = arith.constant 0 : index
    %121 = vector.load %arg6[%c0_46, %c0_47] : memref<8x1xf32, #tpu.memory_space<vmem>>, vector<8x1xf32>
    %122 = vector.broadcast %121 : vector<8x1xf32> to vector<8x256xf32>
    %123 = arith.addf %120, %122 : vector<8x256xf32>
    %124 = arith.addf %123, %1 : vector<8x256xf32>
    %cst_48 = arith.constant 0.000000e+00 : f32
    %125 = vector.broadcast %cst_48 : f32 to vector<8x256xf32>
    %126 = arith.maximumf %124, %125 : vector<8x256xf32>
    %c0_49 = arith.constant 0 : index
    %c0_50 = arith.constant 0 : index
    %c0_51 = arith.constant 0 : index
    %127 = vector.load %arg7[%c0_49, %c0_50, %c0_51] : memref<1x8x256xf32, #tpu.memory_space<vmem>>, vector<1x8x256xf32>
    %128 = vector.shape_cast %127 : vector<1x8x256xf32> to vector<8x256xf32>
    %129 = vector.shape_cast %126 : vector<8x256xf32> to vector<1x8x256xf32>
    tpu.vector_store %arg7[%c0_49, %c0_50, %c0_51], %129 {strides = array<i32>} : memref<1x8x256xf32, #tpu.memory_space<vmem>>, vector<1x8x256xf32>,
    return
  }
  func.func @transform_0(%arg0: i32) -> (i32, i32) {
    %c0_i32 = arith.constant 0 : i32
    %c0_i32_0 = arith.constant 0 : i32
    %c0_i32_1 = arith.constant 0 : i32
    return %c0_i32, %c0_i32_0 : i32, i32
  }
  func.func @transform_1(%arg0: i32) -> (i32, i32, i32) {
    %c0_i32 = arith.constant 0 : i32
    %c0_i32_0 = arith.constant 0 : i32
    %c0_i32_1 = arith.constant 0 : i32
    return %arg0, %c0_i32, %c0_i32_0 : i32, i32, i32
  }
  func.func @transform_2(%arg0: i32) -> (i32, i32) {
    %c0_i32 = arith.constant 0 : i32
    %c0_i32_0 = arith.constant 0 : i32
    %c0_i32_1 = arith.constant 0 : i32
    return %c0_i32, %c0_i32_0 : i32, i32
  }
  func.func @transform_3(%arg0: i32) -> (i32, i32) {
    %c0_i32 = arith.constant 0 : i32
    %c0_i32_0 = arith.constant 0 : i32
    %c0_i32_1 = arith.constant 0 : i32
    return %c0_i32, %c0_i32_0 : i32, i32
  }
  func.func @transform_4(%arg0: i32) -> (i32, i32) {
    %c0_i32 = arith.constant 0 : i32
    %c0_i32_0 = arith.constant 0 : i32
    %c0_i32_1 = arith.constant 0 : i32
    return %c0_i32, %c0_i32_0 : i32, i32
  }
  func.func @transform_5(%arg0: i32) -> (i32, i32) {
    %c0_i32 = arith.constant 0 : i32
    %c0_i32_0 = arith.constant 0 : i32
    %c0_i32_1 = arith.constant 0 : i32
    return %c0_i32, %c0_i32_0 : i32, i32
  }
  func.func @transform_6(%arg0: i32) -> (i32, i32, i32) {
    %c0_i32 = arith.constant 0 : i32
    %c0_i32_0 = arith.constant 0 : i32
    %c0_i32_1 = arith.constant 0 : i32
    return %arg0, %c0_i32, %c0_i32_0 : i32, i32, i32
  }
}

</mosaic_0001>

<llo_original>
// kernel: tpu_custom_call.1
$region0: #{tpu_custom_call.1}
  #allocation0 [shape = 'u32[]', space=smem, size = 0x4, offset = 0x4, fixed_abs, tag = 'smem constant byte address 0x4 - core index']
  #allocation1 [shape = 'u32[72,128]{1,0:T(1,128)}', space=vmem, size = 0x9000, scoped, tag = 'internal scratch']
  %s0 = inlined_call_operand.hbm [shape: f32[9,256], index: 0, kind: input, shape index: {}]
  %s1 = inlined_call_operand.hbm [shape: f32[2,8,256], index: 1, kind: input, shape index: {}]
  %s2 = inlined_call_operand.vmem [shape: bf16[8,72], index: 2, kind: input, shape index: {}]
  %s3 = inlined_call_operand.vmem [shape: f32[8,1], index: 3, kind: input, shape index: {}]
  %s4 = inlined_call_operand.vmem [shape: bf16[8,72], index: 4, kind: input, shape index: {}]
  %s5 = inlined_call_operand.vmem [shape: f32[8,1], index: 5, kind: input, shape index: {}]
  %s6 = inlined_call_operand.hbm [shape: f32[2,8,256], index: 6, kind: output, shape index: {}]
  %s7 = sld [smem:[#allocation0]]
  $region65: #{tpu_custom_call.1} parent=0
    _
  %s9 = ssub.s32 1, %s7
  %s10 = scalar_select 0, %s9, %s7
  $region1: #{tpu_custom_call.1} parent=0
    #allocation2 [shape = 'u8[16384]{0}', space=vmem, size = 0x4000, scoped, tag = 'input window, operand 0, single buffered']
    #allocation3 [shape = 's32[2]{0}', space=sflag, size = 0x8, scoped, tag = 'scoped memory for tpu_custom_call.1']
    #allocation4 [shape = 's32[2]{0}', space=sflag, size = 0x8, scoped, tag = 'scoped memory for tpu_custom_call.1']
    #allocation5 [shape = 'u8[16384]{0}', space=vmem, size = 0x4000, scoped, tag = 'input window, operand 1']
    #allocation6 [shape = 's32[2]{0}', space=sflag, size = 0x8, scoped, tag = 'scoped memory for tpu_custom_call.1']
    #allocation7 [shape = 'u8[16384]{0}', space=vmem, size = 0x4000, scoped, tag = 'output window, operand 0']
    %11 = vsyncpa [#allocation3], 0
    %12 = vsyncpa [#allocation6], 0
    %s13 = scalar_lea.sflag [#allocation6], 1
    %14 = vsyncpa %s13, 0
    %15 = vsyncpa [#allocation4], 0
    %s16 = scalar_lea.sflag [#allocation4], 1
    %17 = vsyncpa %s16, 0
    loop: start=0, step=1, limit=4
    $region2: #{tpu_custom_call.1} parent=1 // loop_pre_header
      _
    $region3: #{tpu_custom_call.1} parent=1 // loop_header
      %s19 = sphi 0, %s23
      %p20 = scmp.ge.s32.totalorder %s19, 4
      %s27 = sphi 0, %s27
      %s29 = sphi 0, %s27
      %s30 = sphi 0, %s29
      %s44 = sphi 0, %s30
      %s50 = sphi 0, %s52
      %s53 = sphi 0, %s50
      %s54 = sphi 0, %s53
      %s70 = sphi 0, %s54
      %s74 = sphi 0, %s74
      %s76 = sphi 0, %s74
      %s77 = sphi 0, %s76
      %s91 = sphi 0, %s77
      %s95 = sphi 0, %s95
      %s97 = sphi 0, %s95
      %s98 = sphi 0, %s97
      %s112 = sphi 0, %s98
      %s116 = sphi 0, %s116
      %s118 = sphi 0, %s116
      %s119 = sphi 0, %s118
      %s133 = sphi 0, %s119
      %s137 = sphi 0, %s137
      %s139 = sphi 0, %s137
      %s140 = sphi 0, %s139
      %s154 = sphi 0, %s140
      %s160 = sphi 0, %s162
      %s163 = sphi 0, %s160
      %s164 = sphi 0, %s163
      %s180 = sphi 0, %s164
    $region4: #{tpu_custom_call.1} parent=1 // loop_header_branch
      %22 = sbr.rel (%p20) target = $region8
    $region5: #{tpu_custom_call.1} parent=1 // loop_body
      %s24 = ssub.s32 %s19, 1
      %s25 = ssub.s32 %s19, 2
      %s26 = sadd.s32 %s19, 1
      %s28 = sadd.s32 %s27, 1
      %p31 = scmp.eq.s32.totalorder %s19, 1
      %p32 = scmp.ne.s32.totalorder %s27, %s29
      %p33 = scmp.eq.s32.totalorder %s19, 0
      %p34 = por %p32, %p33
      %p35 = scmp.ne.s32.totalorder %s27, %s29
      %p36 = scmp.eq.s32.totalorder %s24, 1
      %p37 = por %p35, %p36
      %p38 = scmp.ne.s32.totalorder %s29, %s30
      %p39 = scmp.eq.s32.totalorder %s24, 0
      %p40 = por %p38, %p39
      %p41 = scmp.ne.s32.totalorder %s29, %s30
      %p42 = scmp.eq.s32.totalorder %s25, 1
      %p43 = por %p41, %p42
      %p45 = scmp.ne.s32.totalorder %s30, %s44
      %p46 = scmp.eq.s32.totalorder %s25, 0
      %p47 = por %p45, %p46
      %s48 = ssub.s32 %s19, %s26
      %p49 = scmp.eq.s32.totalorder %s48, 0
      %s51 = sadd.s32 %s50, 1
      %s52 = scalar_select %p49, %s50, %s51
      %p55 = pneg %p49
      %p56 = scmp.eq.s32.totalorder %s19, 1
      %p57 = por %p55, %p56
      %p58 = scmp.ne.s32.totalorder %s50, %s53
      %p59 = scmp.eq.s32.totalorder %s19, 0
      %p60 = por %p58, %p59
      %p61 = scmp.ne.s32.totalorder %s50, %s53
      %p62 = scmp.eq.s32.totalorder %s24, 1
      %p63 = por %p61, %p62
      %p64 = scmp.ne.s32.totalorder %s53, %s54
      %p65 = scmp.eq.s32.totalorder %s24, 0
      %p66 = por %p64, %p65
      %p67 = scmp.ne.s32.totalorder %s53, %s54
      %p68 = scmp.eq.s32.totalorder %s25, 1
      %p69 = por %p67, %p68
      %p71 = scmp.ne.s32.totalorder %s54, %s70
      %p72 = scmp.eq.s32.totalorder %s25, 0
      %p73 = por %p71, %p72
      %s75 = sadd.s32 %s74, 1
      %p78 = scmp.eq.s32.totalorder %s19, 1
      %p79 = scmp.ne.s32.totalorder %s74, %s76
      %p80 = scmp.eq.s32.totalorder %s19, 0
      %p81 = por %p79, %p80
      %p82 = scmp.ne.s32.totalorder %s74, %s76
      %p83 = scmp.eq.s32.totalorder %s24, 1
      %p84 = por %p82, %p83
      %p85 = scmp.ne.s32.totalorder %s76, %s77
      %p86 = scmp.eq.s32.totalorder %s24, 0
      %p87 = por %p85, %p86
      %p88 = scmp.ne.s32.totalorder %s76, %s77
      %p89 = scmp.eq.s32.totalorder %s25, 1
      %p90 = por %p88, %p89
      %p92 = scmp.ne.s32.totalorder %s77, %s91
      %p93 = scmp.eq.s32.totalorder %s25, 0
      %p94 = por %p92, %p93
      %s96 = sadd.s32 %s95, 1
      %p99 = scmp.eq.s32.totalorder %s19, 1
      %p100 = scmp.ne.s32.totalorder %s95, %s97
      %p101 = scmp.eq.s32.totalorder %s19, 0
      %p102 = por %p100, %p101
      %p103 = scmp.ne.s32.totalorder %s95, %s97
      %p104 = scmp.eq.s32.totalorder %s24, 1
      %p105 = por %p103, %p104
      %p106 = scmp.ne.s32.totalorder %s97, %s98
      %p107 = scmp.eq.s32.totalorder %s24, 0
      %p108 = por %p106, %p107
      %p109 = scmp.ne.s32.totalorder %s97, %s98
      %p110 = scmp.eq.s32.totalorder %s25, 1
      %p111 = por %p109, %p110
      %p113 = scmp.ne.s32.totalorder %s98, %s112
      %p114 = scmp.eq.s32.totalorder %s25, 0
      %p115 = por %p113, %p114
      %s117 = sadd.s32 %s116, 1
      %p120 = scmp.eq.s32.totalorder %s19, 1
      %p121 = scmp.ne.s32.totalorder %s116, %s118
      %p122 = scmp.eq.s32.totalorder %s19, 0
      %p123 = por %p121, %p122
      %p124 = scmp.ne.s32.totalorder %s116, %s118
      %p125 = scmp.eq.s32.totalorder %s24, 1
      %p126 = por %p124, %p125
      %p127 = scmp.ne.s32.totalorder %s118, %s119
      %p128 = scmp.eq.s32.totalorder %s24, 0
      %p129 = por %p127, %p128
      %p130 = scmp.ne.s32.totalorder %s118, %s119
      %p131 = scmp.eq.s32.totalorder %s25, 1
      %p132 = por %p130, %p131
      %p134 = scmp.ne.s32.totalorder %s119, %s133
      %p135 = scmp.eq.s32.totalorder %s25, 0
      %p136 = por %p134, %p135
      %s138 = sadd.s32 %s137, 1
      %p141 = scmp.eq.s32.totalorder %s19, 1
      %p142 = scmp.ne.s32.totalorder %s137, %s139
      %p143 = scmp.eq.s32.totalorder %s19, 0
      %p144 = por %p142, %p143
      %p145 = scmp.ne.s32.totalorder %s137, %s139
      %p146 = scmp.eq.s32.totalorder %s24, 1
      %p147 = por %p145, %p146
      %p148 = scmp.ne.s32.totalorder %s139, %s140
      %p149 = scmp.eq.s32.totalorder %s24, 0
      %p150 = por %p148, %p149
      %p151 = scmp.ne.s32.totalorder %s139, %s140
      %p152 = scmp.eq.s32.totalorder %s25, 1
      %p153 = por %p151, %p152
      %p155 = scmp.ne.s32.totalorder %s140, %s154
      %p156 = scmp.eq.s32.totalorder %s25, 0
      %p157 = por %p155, %p156
      %s158 = ssub.s32 %s19, %s26
      %p159 = scmp.eq.s32.totalorder %s158, 0
      %s161 = sadd.s32 %s160, 1
      %s162 = scalar_select %p159, %s160, %s161
      %p165 = pneg %p159
      %p166 = scmp.eq.s32.totalorder %s19, 1
      %p167 = por %p165, %p166
      %p168 = scmp.ne.s32.totalorder %s160, %s163
      %p169 = scmp.eq.s32.totalorder %s19, 0
      %p170 = por %p168, %p169
      %p171 = scmp.ne.s32.totalorder %s160, %s163
      %p172 = scmp.eq.s32.totalorder %s24, 1
      %p173 = por %p171, %p172
      %p174 = scmp.ne.s32.totalorder %s163, %s164
      %p175 = scmp.eq.s32.totalorder %s24, 0
      %p176 = por %p174, %p175
      %p177 = scmp.ne.s32.totalorder %s163, %s164
      %p178 = scmp.eq.s32.totalorder %s25, 1
      %p179 = por %p177, %p178
      %p181 = scmp.ne.s32.totalorder %s164, %s180
      %p182 = scmp.eq.s32.totalorder %s25, 0
      %p183 = por %p181, %p182
      %p184 = scmp.le.s32.totalorder 1, %s19
      %p185 = scmp.lt.s32.totalorder %s19, 3
      %p186 = pnand %p184, %p185
      %p187 = pneg %p186
      // Predicated region
      $region9: #{tpu_custom_call.1} parent=5 // pred_check
        _
      $region10: #{tpu_custom_call.1} parent=5 // pred_check_branch
        %189 = sbr.rel (%p186) target = $region12
      $region11: #{tpu_custom_call.1} parent=5 // pred_region
        %s190 = ssub.s32 %s19, 1
        // Predicated region
        $region13: #{tpu_custom_call.1} parent=11 // pred_check
          %p191 = pneg %p40
        $region14: #{tpu_custom_call.1} parent=11 // pred_check_branch
          %193 = sbr.rel (%p191) target = $region16
        $region15: #{tpu_custom_call.1} parent=11 // pred_region
          %195 = vsyncadd [#allocation3], 0
          %s196 = sshll.u32 %s0, 4
          %s197 = int_to_ptr.hbm [resolvable:$true] %s196
          %s198 = sshll.u32 [#allocation2], 4
          %s199 = int_to_ptr.vmem [resolvable:$true] %s198
          %204 = dma.hbm_to_vmem [thread:$0]  %s197, 512, %s199, [#allocation3], 256, 256, 16
        $region16: #{tpu_custom_call.1} parent=11 // pred_fallthru
          _
        // Predicated region
        $region17: #{tpu_custom_call.1} parent=11 // pred_check
          %p205 = pneg %p87
        $region18: #{tpu_custom_call.1} parent=11 // pred_check_branch
          %207 = sbr.rel (%p205) target = $region20
        $region19: #{tpu_custom_call.1} parent=11 // pred_region
          _
        $region20: #{tpu_custom_call.1} parent=11 // pred_fallthru
          _
        // Predicated region
        $region21: #{tpu_custom_call.1} parent=11 // pred_check
          %p208 = pneg %p108
        $region22: #{tpu_custom_call.1} parent=11 // pred_check_branch
          %210 = sbr.rel (%p208) target = $region24
        $region23: #{tpu_custom_call.1} parent=11 // pred_region
          _
        $region24: #{tpu_custom_call.1} parent=11 // pred_fallthru
          _
        // Predicated region
        $region25: #{tpu_custom_call.1} parent=11 // pred_check
          %p211 = pneg %p129
        $region26: #{tpu_custom_call.1} parent=11 // pred_check_branch
          %213 = sbr.rel (%p211) target = $region28
        $region27: #{tpu_custom_call.1} parent=11 // pred_region
          _
        $region28: #{tpu_custom_call.1} parent=11 // pred_fallthru
          _
        // Predicated region
        $region29: #{tpu_custom_call.1} parent=11 // pred_check
          %p214 = pneg %p150
        $region30: #{tpu_custom_call.1} parent=11 // pred_check_branch
          %216 = sbr.rel (%p214) target = $region32
        $region31: #{tpu_custom_call.1} parent=11 // pred_region
          _
        $region32: #{tpu_custom_call.1} parent=11 // pred_fallthru
          _
      $region12: #{tpu_custom_call.1} parent=5 // pred_fallthru
        _
      %p217 = scmp.lt.s32.totalorder %s19, 2
      // Predicated region
      $region33: #{tpu_custom_call.1} parent=5 // pred_check
        %p218 = pneg %p217
      $region34: #{tpu_custom_call.1} parent=5 // pred_check_branch
        %220 = sbr.rel (%p218) target = $region36
      $region35: #{tpu_custom_call.1} parent=5 // pred_region
        // Predicated region
        $region37: #{tpu_custom_call.1} parent=35 // pred_check
          %p221 = pneg %p60
        $region38: #{tpu_custom_call.1} parent=35 // pred_check_branch
          %223 = sbr.rel (%p221) target = $region40
        $region39: #{tpu_custom_call.1} parent=35 // pred_region
          %s224 = sand.u32 %s50, 1
          %s225 = scalar_lea.sflag [#allocation6], %s224
          %s226 = sand.u32 %s50, 1
          %s227 = smul.addr %s226, 16
          %s228 = scalar_lea.vmem [#allocation5], %s227
          %230 = vsyncadd %s225, 0
          %s231 = smul.addr %s19, 2
          %s232 = smul.addr %s231, 8
          %s233 = scalar_lea.hbm %s1, %s232
          %s235 = sshll.u32 %s233, 4
          %s236 = int_to_ptr.hbm [resolvable:$true] %s235
          %s237 = sshll.u32 %s228, 4
          %s238 = int_to_ptr.vmem [resolvable:$true] %s237
          %240 = dma.hbm_to_vmem [thread:$0]  %s236, 256, %s238, %s225
        $region40: #{tpu_custom_call.1} parent=35 // pred_fallthru
          _
      $region36: #{tpu_custom_call.1} parent=5 // pred_fallthru
        _
      %p241 = scmp.le.s32.totalorder 1, %s19
      %p242 = scmp.lt.s32.totalorder %s19, 3
      %p243 = pnand %p241, %p242
      %p244 = pneg %p243
      // Predicated region
      $region41: #{tpu_custom_call.1} parent=5 // pred_check
        _
      $region42: #{tpu_custom_call.1} parent=5 // pred_check_branch
        %246 = sbr.rel (%p243) target = $region44
      $region43: #{tpu_custom_call.1} parent=5 // pred_region
        %s247 = ssub.s32 %s19, 1
        // Predicated region
        $region45: #{tpu_custom_call.1} parent=43 // pred_check
          %p248 = pneg %p40
        $region46: #{tpu_custom_call.1} parent=43 // pred_check_branch
          %250 = sbr.rel (%p248) target = $region48
        $region47: #{tpu_custom_call.1} parent=43 // pred_region
          %252 = dma.done [#allocation3], 512
        $region48: #{tpu_custom_call.1} parent=43 // pred_fallthru
          _
        %s253 = sand.u32 %s53, 1
        %s254 = scalar_lea.sflag [#allocation6], %s253
        %s255 = sand.u32 %s53, 1
        %s256 = smul.addr %s255, 16
        %s257 = scalar_lea.vmem [#allocation5], %s256
        // Predicated region
        $region49: #{tpu_custom_call.1} parent=43 // pred_check
          %p258 = pneg %p66
        $region50: #{tpu_custom_call.1} parent=43 // pred_check_branch
          %260 = sbr.rel (%p258) target = $region52
        $region51: #{tpu_custom_call.1} parent=43 // pred_region
          %262 = dma.done %s254, 256
        $region52: #{tpu_custom_call.1} parent=43 // pred_fallthru
          _
        %p263 = pneg %p40
        %p264 = pneg %p37
        %s265 = sand.u32 %s53, 1
        %s266 = scalar_lea.sflag [#allocation6], %s265
        %s267 = sand.u32 %s53, 1
        %s268 = smul.addr %s267, 16
        %s269 = scalar_lea.vmem [#allocation5], %s268
        %p270 = pneg %p66
        %p271 = pneg %p63
        %p272 = pneg %p87
        %p273 = pneg %p84
        %p274 = pneg %p108
        %p275 = pneg %p105
        %p276 = pneg %p129
        %p277 = pneg %p126
        %p278 = pneg %p150
        %p279 = pneg %p147
        %p280 = pneg %p176
        %p281 = pneg %p173
        %s282 = sand.u32 %s163, 1
        %s283 = scalar_lea.sflag [#allocation4], %s282
        %s284 = sand.u32 %s163, 1
        %s285 = smul.addr %s284, 16
        %s286 = scalar_lea.vmem [#allocation7], %s285
        %v288 = vld [vmem:[%s257] sm:$0xff]
        %v289 = vld [vmem:[%s257 + $0x8] sm:$0xff]
        %v290 = vld [vmem:[%s2] sm:$0xf]
        %291 = vrot.lane.b32.xlu0 %v288, 17
        %v292 = vpop.permute.xlu0 %291
        %293 = vrot.lane.b32.xlu0 %v289, 17
        %v294 = vpop.permute.xlu0 %293
        %v295 = vlaneseq
        %v296 = vand.u32 %v295, 127
        %vm297 = vcmp.lt.s32.totalorder %v296, 17
        %v298 = vsel %vm297, %v292, %v294
        %v299 = vsel %vm297, %v294, %v292
        %v300 = vld [vmem:[#allocation2] ss:$8 sm:$0x3]
        %v302 = vperm.slane %v300, 0
        %v303 = vperm.slane %v300, 1
        %v306 = vmul.f32 %v299, %v302
        %v307 = vmul.f32 %v298, %v303
        %308 = vrot.lane.b32.xlu0 %v288, 16
        %v309 = vpop.permute.xlu0 %308
        %310 = vrot.lane.b32.xlu0 %v289, 16
        %v311 = vpop.permute.xlu0 %310
        %vm312 = vcmp.lt.s32.totalorder %v296, 16
        %v313 = vsel %vm312, %v309, %v311
        %v314 = vsel %vm312, %v311, %v309
        %s315 = scalar_lea.vmem [#allocation2], 1
        %v316 = vld [vmem:[%s315] ss:$8 sm:$0x3]
        %v318 = vperm.slane %v316, 0
        %v319 = vperm.slane %v316, 1
        %v322 = vmul.f32 %v314, %v318
        %v323 = vmul.f32 %v313, %v319
        %324 = vrot.lane.b32.xlu0 %v288, 15
        %v325 = vpop.permute.xlu0 %324
        %326 = vrot.lane.b32.xlu0 %v289, 15
        %v327 = vpop.permute.xlu0 %326
        %vm328 = vcmp.lt.s32.totalorder %v296, 15
        %v329 = vsel %vm328, %v325, %v327
        %v330 = vsel %vm328, %v327, %v325
        %s331 = scalar_lea.vmem [#allocation2], 2
        %v332 = vld [vmem:[%s331] ss:$8 sm:$0x3]
        %v334 = vperm.slane %v332, 0
        %v335 = vperm.slane %v332, 1
        %v338 = vmul.f32 %v330, %v334
        %v339 = vmul.f32 %v329, %v335
        %340 = vrot.lane.b32.xlu0 %v288, 1
        %v341 = vpop.permute.xlu0 %340
        %342 = vrot.lane.b32.xlu0 %v289, 1
        %v343 = vpop.permute.xlu0 %342
        %vm344 = vcmp.lt.s32.totalorder %v296, 1
        %v345 = vsel %vm344, %v341, %v343
        %v346 = vsel %vm344, %v343, %v341
        %s347 = scalar_lea.vmem [#allocation2], 3
        %v348 = vld [vmem:[%s347] ss:$8 sm:$0x3]
        %v350 = vperm.slane %v348, 0
        %v351 = vperm.slane %v348, 1
        %v354 = vmul.f32 %v346, %v350
        %v355 = vmul.f32 %v345, %v351
        %s356 = scalar_lea.vmem [#allocation2], 4
        %v357 = vld [vmem:[%s356] ss:$8 sm:$0x3]
        %v359 = vperm.slane %v357, 0
        %v360 = vperm.slane %v357, 1
        %v363 = vmul.f32 %v288, %v359
        %v364 = vmul.f32 %v289, %v360
        %365 = vrot.lane.b32.xlu0 %v288, 127
        %v366 = vpop.permute.xlu0 %365
        %367 = vrot.lane.b32.xlu0 %v289, 127
        %v368 = vpop.permute.xlu0 %367
        %vm369 = vcmp.lt.s32.totalorder %v296, 127
        %v370 = vsel %vm369, %v366, %v368
        %v371 = vsel %vm369, %v368, %v366
        %s372 = scalar_lea.vmem [#allocation2], 5
        %v373 = vld [vmem:[%s372] ss:$8 sm:$0x3]
        %v375 = vperm.slane %v373, 0
        %v376 = vperm.slane %v373, 1
        %v379 = vmul.f32 %v370, %v375
        %v380 = vmul.f32 %v371, %v376
        %381 = vrot.lane.b32.xlu0 %v288, 113
        %v382 = vpop.permute.xlu0 %381
        %383 = vrot.lane.b32.xlu0 %v289, 113
        %v384 = vpop.permute.xlu0 %383
        %vm385 = vcmp.lt.s32.totalorder %v296, 113
        %v386 = vsel %vm385, %v382, %v384
        %v387 = vsel %vm385, %v384, %v382
        %s388 = scalar_lea.vmem [#allocation2], 6
        %v389 = vld [vmem:[%s388] ss:$8 sm:$0x3]
        %v391 = vperm.slane %v389, 0
        %v392 = vperm.slane %v389, 1
        %v395 = vmul.f32 %v386, %v391
        %v396 = vmul.f32 %v387, %v392
        %397 = vrot.lane.b32.xlu0 %v288, 112
        %v398 = vpop.permute.xlu0 %397
        %399 = vrot.lane.b32.xlu0 %v289, 112
        %v400 = vpop.permute.xlu0 %399
        %vm401 = vcmp.lt.s32.totalorder %v296, 112
        %v402 = vsel %vm401, %v398, %v400
        %v403 = vsel %vm401, %v400, %v398
        %s404 = scalar_lea.vmem [#allocation2], 7
        %v405 = vld [vmem:[%s404] ss:$8 sm:$0x3]
        %v407 = vperm.slane %v405, 0
        %v408 = vperm.slane %v405, 1
        %v411 = vmul.f32 %v402, %v407
        %v412 = vmul.f32 %v403, %v408
        %413 = vrot.lane.b32.xlu0 %v288, 111
        %v414 = vpop.permute.xlu0 %413
        %415 = vrot.lane.b32.xlu0 %v289, 111
        %v416 = vpop.permute.xlu0 %415
        %vm417 = vcmp.lt.s32.totalorder %v296, 111
        %v418 = vsel %vm417, %v414, %v416
        %v419 = vsel %vm417, %v416, %v414
        %s420 = scalar_lea.vmem [#allocation2], 16
        %v421 = vld [vmem:[%s420] ss:$8 sm:$0x3]
        %v423 = vperm.slane %v421, 0
        %v424 = vperm.slane %v421, 1
        %v427 = vmul.f32 %v418, %v423
        %v428 = vmul.f32 %v419, %v424
        %v429 = vpack.c.bf16 %v322, %v306
        %v430 = vpack.c.bf16 %v323, %v307
        %v431 = vpack.c.bf16 %v354, %v338
        %v432 = vpack.c.bf16 %v355, %v339
        %v433 = vpack.c.bf16 %v379, %v363
        %v434 = vpack.c.bf16 %v380, %v364
        %v435 = vpack.c.bf16 %v411, %v395
        %v436 = vpack.c.bf16 %v412, %v396
        %v437 = vpack.c.bf16 %v427, %v427
        %v438 = vpack.c.bf16 %v428, %v428
        %v439 = vld [vmem:[%s3] sm:$0xff]
        %441 = vset.pattern.permute.xlu0 0
        %442 = vperm.xlu0 %441, %v439
        %v443 = vpop.permute.xlu0 %442
        %vm445 = vcmask 588800
        %v447 = vsel %vm445, %v290, 0
        %vm449 = vcmask 1043456
        %v451 = vsel %vm449, %v437, 0
        %v454 = vsel %vm449, %v438, 0
        %456 = vmatpush.bf16.msra.mxu0 0
        %457 = vmatpush.bf16.msra.mxu0 0
        %458 = vmatpush.bf16.msra.mxu0 0
        %459 = vmatpush.bf16.msra.mxu0 %v451
        %460 = vmatpush.bf16.msra.mxu0 %v435
        %461 = vmatpush.bf16.msra.mxu0 %v433
        %462 = vmatpush.bf16.msra.mxu0 %v431
        %463 = vmatpush.bf16.msra.mxu0 %v429
        %464 = vmatmul.bf16.gmra.mxu0 %v447
        %v465 = vpop.f32.mrf.mxu0
        %v466 = vadd.f32 %v443, %v465
        %v467 = vpop.f32.mrf.mxu0
        %468 = vdwg.mxu0
        %469 = vmatpush.bf16.msra.mxu0 0
        %470 = vmatpush.bf16.msra.mxu0 0
        %471 = vmatpush.bf16.msra.mxu0 0
        %472 = vmatpush.bf16.msra.mxu0 %v454
        %473 = vmatpush.bf16.msra.mxu0 %v436
        %474 = vmatpush.bf16.msra.mxu0 %v434
        %475 = vmatpush.bf16.msra.mxu0 %v432
        %476 = vmatpush.bf16.msra.mxu0 %v430
        %477 = vmatmul.bf16.gmra.mxu0 %v447
        %v478 = vpop.f32.mrf.mxu0
        %v479 = vadd.f32 %v443, %v478
        %v480 = vpop.f32.mrf.mxu0
        %481 = vdwg.mxu0
        %v482 = vmax.f32 %v466, 0.0
        %v483 = vmax.f32 %v479, 0.0
        %v484 = vld [vmem:[%s4] sm:$0xf]
        %485 = vrot.lane.b32.xlu0 %v482, 17
        %v486 = vpop.permute.xlu0 %485
        %487 = vrot.lane.b32.xlu0 %v483, 17
        %v488 = vpop.permute.xlu0 %487
        %v489 = vsel %vm297, %v486, %v488
        %v490 = vsel %vm297, %v488, %v486
        %v491 = vmul.f32 %v490, %v302
        %v492 = vmul.f32 %v489, %v303
        %493 = vrot.lane.b32.xlu0 %v482, 16
        %v494 = vpop.permute.xlu0 %493
        %495 = vrot.lane.b32.xlu0 %v483, 16
        %v496 = vpop.permute.xlu0 %495
        %v497 = vsel %vm312, %v494, %v496
        %v498 = vsel %vm312, %v496, %v494
        %v499 = vmul.f32 %v498, %v318
        %v500 = vmul.f32 %v497, %v319
        %501 = vrot.lane.b32.xlu0 %v482, 15
        %v502 = vpop.permute.xlu0 %501
        %503 = vrot.lane.b32.xlu0 %v483, 15
        %v504 = vpop.permute.xlu0 %503
        %v505 = vsel %vm328, %v502, %v504
        %v506 = vsel %vm328, %v504, %v502
        %v507 = vmul.f32 %v506, %v334
        %v508 = vmul.f32 %v505, %v335
        %509 = vrot.lane.b32.xlu0 %v482, 1
        %v510 = vpop.permute.xlu0 %509
        %511 = vrot.lane.b32.xlu0 %v483, 1
        %v512 = vpop.permute.xlu0 %511
        %v513 = vsel %vm344, %v510, %v512
        %v514 = vsel %vm344, %v512, %v510
        %v515 = vmul.f32 %v514, %v350
        %v516 = vmul.f32 %v513, %v351
        %v517 = vmul.f32 %v482, %v359
        %v518 = vmul.f32 %v483, %v360
        %519 = vrot.lane.b32.xlu0 %v482, 127
        %v520 = vpop.permute.xlu0 %519
        %521 = vrot.lane.b32.xlu0 %v483, 127
        %v522 = vpop.permute.xlu0 %521
        %v523 = vsel %vm369, %v520, %v522
        %v524 = vsel %vm369, %v522, %v520
        %v525 = vmul.f32 %v523, %v375
        %v526 = vmul.f32 %v524, %v376
        %527 = vrot.lane.b32.xlu0 %v482, 113
        %v528 = vpop.permute.xlu0 %527
        %529 = vrot.lane.b32.xlu0 %v483, 113
        %v530 = vpop.permute.xlu0 %529
        %v531 = vsel %vm385, %v528, %v530
        %v532 = vsel %vm385, %v530, %v528
        %v533 = vmul.f32 %v531, %v391
        %v534 = vmul.f32 %v532, %v392
        %535 = vrot.lane.b32.xlu0 %v482, 112
        %v536 = vpop.permute.xlu0 %535
        %537 = vrot.lane.b32.xlu0 %v483, 112
        %v538 = vpop.permute.xlu0 %537
        %v539 = vsel %vm401, %v536, %v538
        %v540 = vsel %vm401, %v538, %v536
        %v541 = vmul.f32 %v539, %v407
        %v542 = vmul.f32 %v540, %v408
        %543 = vrot.lane.b32.xlu0 %v482, 111
        %v544 = vpop.permute.xlu0 %543
        %545 = vrot.lane.b32.xlu0 %v483, 111
        %v546 = vpop.permute.xlu0 %545
        %v547 = vsel %vm417, %v544, %v546
        %v548 = vsel %vm417, %v546, %v544
        %v549 = vmul.f32 %v547, %v423
        %v550 = vmul.f32 %v548, %v424
        %v551 = vpack.c.bf16 %v499, %v491
        %v552 = vpack.c.bf16 %v500, %v492
        %v553 = vpack.c.bf16 %v515, %v507
        %v554 = vpack.c.bf16 %v516, %v508
        %v555 = vpack.c.bf16 %v525, %v517
        %v556 = vpack.c.bf16 %v526, %v518
        %v557 = vpack.c.bf16 %v541, %v533
        %v558 = vpack.c.bf16 %v542, %v534
        %v559 = vpack.c.bf16 %v549, %v549
        %v560 = vpack.c.bf16 %v550, %v550
        %v561 = vld [vmem:[%s5] sm:$0xff]
        %563 = vset.pattern.permute.xlu0 0
        %564 = vperm.xlu0 %563, %v561
        %v565 = vpop.permute.xlu0 %564
        %v568 = vsel %vm445, %v484, 0
        %v571 = vsel %vm449, %v559, 0
        %v574 = vsel %vm449, %v560, 0
        %576 = vmatpush.bf16.msra.mxu0 0
        %577 = vmatpush.bf16.msra.mxu0 0
        %578 = vmatpush.bf16.msra.mxu0 0
        %579 = vmatpush.bf16.msra.mxu0 %v571
        %580 = vmatpush.bf16.msra.mxu0 %v557
        %581 = vmatpush.bf16.msra.mxu0 %v555
        %582 = vmatpush.bf16.msra.mxu0 %v553
        %583 = vmatpush.bf16.msra.mxu0 %v551
        %584 = vmatmul.bf16.gmra.mxu0 %v568
        %v585 = vpop.f32.mrf.mxu0
        %v586 = vadd.f32 %v565, %v585
        %v587 = vpop.f32.mrf.mxu0
        %588 = vdwg.mxu0
        %589 = vmatpush.bf16.msra.mxu0 0
        %590 = vmatpush.bf16.msra.mxu0 0
        %591 = vmatpush.bf16.msra.mxu0 0
        %592 = vmatpush.bf16.msra.mxu0 %v574
        %593 = vmatpush.bf16.msra.mxu0 %v558
        %594 = vmatpush.bf16.msra.mxu0 %v556
        %595 = vmatpush.bf16.msra.mxu0 %v554
        %596 = vmatpush.bf16.msra.mxu0 %v552
        %597 = vmatmul.bf16.gmra.mxu0 %v568
        %v598 = vpop.f32.mrf.mxu0
        %v599 = vadd.f32 %v565, %v598
        %v600 = vpop.f32.mrf.mxu0
        %601 = vdwg.mxu0
        %v602 = vadd.f32 %v586, %v288
        %v603 = vadd.f32 %v599, %v289
        %v604 = vmax.f32 %v602, 0.0
        %v605 = vmax.f32 %v603, 0.0
        %606 = vst [vmem:[%s286] sm:$0xff] %v604
        %607 = vst [vmem:[%s286 + $0x8] sm:$0xff] %v605
        %s608 = sand.u32 %s163, 1
        %s609 = scalar_lea.sflag [#allocation4], %s608
        %s610 = sand.u32 %s163, 1
        %s611 = smul.addr %s610, 16
        %s612 = scalar_lea.vmem [#allocation7], %s611
        // Predicated region
        $region53: #{tpu_custom_call.1} parent=43 // pred_check
          %p613 = pneg %p173
        $region54: #{tpu_custom_call.1} parent=43 // pred_check_branch
          %615 = sbr.rel (%p613) target = $region56
        $region55: #{tpu_custom_call.1} parent=43 // pred_region
          %617 = vsyncadd %s609, 0
          %s618 = smul.addr %s24, 2
          %s619 = smul.addr %s618, 8
          %s620 = scalar_lea.hbm %s6, %s619
          %s622 = sshll.u32 %s612, 4
          %s623 = int_to_ptr.vmem [resolvable:$true] %s622
          %s624 = sshll.u32 %s620, 4
          %s625 = int_to_ptr.hbm [resolvable:$true] %s624
          %627 = dma.vmem_to_hbm [thread:$0]  %s623, 256, %s625, %s609
        $region56: #{tpu_custom_call.1} parent=43 // pred_fallthru
          _
      $region44: #{tpu_custom_call.1} parent=5 // pred_fallthru
        _
      %p628 = scmp.le.s32.totalorder 2, %s19
      // Predicated region
      $region57: #{tpu_custom_call.1} parent=5 // pred_check
        %p629 = pneg %p628
      $region58: #{tpu_custom_call.1} parent=5 // pred_check_branch
        %631 = sbr.rel (%p629) target = $region60
      $region59: #{tpu_custom_call.1} parent=5 // pred_region
        %s632 = ssub.s32 %s19, 2
        // Predicated region
        $region61: #{tpu_custom_call.1} parent=59 // pred_check
          %p633 = pneg %p179
        $region62: #{tpu_custom_call.1} parent=59 // pred_check_branch
          %635 = sbr.rel (%p633) target = $region64
        $region63: #{tpu_custom_call.1} parent=59 // pred_region
          %s636 = sand.u32 %s164, 1
          %s637 = scalar_lea.sflag [#allocation4], %s636
          %s638 = sand.u32 %s164, 1
          %s639 = smul.addr %s638, 16
          %s640 = scalar_lea.vmem [#allocation7], %s639
          %642 = dma.done %s637, 256
        $region64: #{tpu_custom_call.1} parent=59 // pred_fallthru
          _
      $region60: #{tpu_custom_call.1} parent=5 // pred_fallthru
        _
    $region6: #{tpu_custom_call.1} parent=1 // loop_footer
      %s23 = sadd.s32 1, %s19
    $region7: #{tpu_custom_call.1} parent=1 // loop_footer_branch
      %18 = sbr.rel target = $region3
    $region8: #{tpu_custom_call.1} parent=1 // loop_exit
      _
    %643 = vsyncpa [#allocation3], 1
    %s644 = scalar_lea.sflag [#allocation3], 1
    %645 = vsyncpa %s644, 1
    %646 = vsyncpa [#allocation6], 1
    %s647 = scalar_lea.sflag [#allocation6], 1
    %648 = vsyncpa %s647, 1
    %649 = vsyncpa [#allocation4], 1
    %s650 = scalar_lea.sflag [#allocation4], 1
    %651 = vsyncpa %s650, 1

</llo_original>
